<compile_context>
chip_gen: v7x
topology: tpu7x:2x2x1
jax: 0.10.0
libtpu: 0.0.40
codegen_flags: <defaults>
</compile_context>

<pallas_src>
import functools

import jax
import jax.numpy as jnp
from jax.experimental import pallas as pl
from jax.experimental.pallas import tpu as pltpu


# ---------------------------------------------------------------------------
# Hardware-aware sizing helpers
# ---------------------------------------------------------------------------
def _round_up(x, m):
    return ((x + m - 1) // m) * m


def _padded_lane_bytes(rows, itemsize):
    """Physical VMEM bytes per lane-column of a (rows, block_n) buffer.

    Sub-32-bit dtypes pack along sublanes, so the second-minor dim pads to
    8 (f32/int32), 16 (bf16) or 32 (int8) rows.
    """
    sub = max(8, 32 // max(1, itemsize))
    return _round_up(rows, sub) * itemsize


def _vmem_limits():
    """(vmem_limit_bytes, double-buffered-input budget) for this chip."""
    phys = None
    try:
        phys = getattr(pltpu.get_tpu_info(), "vmem_capacity_bytes", None)
    except Exception:
        phys = None
    if not phys:
        phys = 64 * 1024 * 1024          # conservative: v7x per-TC physical VMEM
    limit = int(min(100 * 1024 * 1024, (int(phys) * 3) // 4))   # 48M v7x, 96M v5e/v6e
    limit = max(limit, 32 * 1024 * 1024)
    input_budget = (limit * 3) // 4      # headroom for scratch / compiler temps
    return limit, input_budget


def _prefers_class_layout():
    """v5e is HBM-bound: the dense layout's extra target re-reads cost more
    bandwidth than the VALU time they save, so keep the class-resident layout
    there in "auto" mode."""
    try:
        kind = jax.devices()[0].device_kind.lower()
        return ("v5 lite" in kind) or ("v5e" in kind) or ("v5litepod" in kind)
    except Exception:
        return False


def _choose_block_n(hw, c, score_itemsize, tgt_itemsize, input_budget):
    """Lane tile for the class-resident layout: big (amortize ~0.35us/step),
    VMEM-safe with sublane-padding-aware accounting."""
    MAX_BLOCK = 128 * 1024                                  # lanes, mult. of 128
    per_lane = (_padded_lane_bytes(c, score_itemsize)
                + _padded_lane_bytes(1, tgt_itemsize))
    cap = input_budget // (2 * per_lane)                    # x2: double-buffered
    cap = max(128, (cap // 128) * 128)
    bn = min(MAX_BLOCK, cap)
    if hw <= bn:
        return hw                                           # single block / image
    return bn


def _choose_rows_blk(n_rows, score_itemsize, tgt_itemsize, input_budget):
    """Row tile (of 128-lane rows) for the lane-dense layout."""
    MAX_ROWS = 8 * 1024
    per_row = 128 * (score_itemsize + tgt_itemsize)
    cap = input_budget // (2 * per_row)
    cap = max(8, (cap // 8) * 8)
    rb = min(MAX_ROWS, cap)
    if n_rows <= rb:
        return n_rows
    return rb


# ---------------------------------------------------------------------------
# Kernel 1: class-resident layout (supports fused softmax)
# ---------------------------------------------------------------------------
def _dice_sums_class_kernel(score_ref, tgt_ref, out_ref,
                            inter_acc, z_acc, y_acc, *,
                            hw, block_n, bps, num_blocks, softmax, needs_mask):
    """Per-(image, split) partial sums of [intersect, z_sum, y_sum] per class.

    score_ref: (C, block_n) block of predicted scores (native dtype)
    tgt_ref:   (1, block_n) block of class labels (native dtype)
    out_ref:   (C, 3) per-(image, split) output, written on the last step
    *_acc:     (C, 1) f32 VMEM accumulators, resident across the k axis
    """
    s_idx = pl.program_id(1)
    k = pl.program_id(2)
    j = s_idx * bps + k                        # global spatial block index

    @pl.when(k == 0)
    def _():
        inter_acc[...] = jnp.zeros_like(inter_acc)
        z_acc[...] = jnp.zeros_like(z_acc)
        y_acc[...] = jnp.zeros_like(y_acc)

    # Cast per block inside the kernel (keeps HBM traffic at native width).
    s = score_ref[...].astype(jnp.float32)                     # (C, block_n)
    t = tgt_ref[...].astype(jnp.int32)                         # (1, block_n)

    if softmax:
        # Softmax over the class (sublane) axis.  exp and the approximate
        # reciprocal of the denominator both go to the EUP; cross-sublane
        # max/sum go to the XLU -- all otherwise-idle slots here.
        m = jnp.max(s, axis=0, keepdims=True)
        e = jnp.exp(s - m)
        denom = jnp.sum(e, axis=0, keepdims=True)
        s = e * pl.reciprocal(denom, approx=True)

    C = s.shape[0]
    class_ids = jax.lax.broadcasted_iota(jnp.int32, (C, 1), 0)  # (C, 1)
    onehot = t == class_ids                                     # (C, block_n)

    def accumulate(sv, oh):
        # Selects instead of cast+multiply (one fewer VALU op per vreg each).
        inter_acc[...] += jnp.sum(jnp.where(oh, sv, 0.0), axis=1, keepdims=True)
        z_acc[...] += jnp.sum(sv * sv, axis=1, keepdims=True)
        y_acc[...] += jnp.sum(jnp.where(oh, 1.0, 0.0), axis=1, keepdims=True)

    if needs_mask:
        # Only the last *global* block is partial: keep the mask (iota +
        # compare + selects) off the steady-state path.
        is_tail = j == num_blocks - 1

        @pl.when(jnp.logical_not(is_tail))
        def _():
            accumulate(s, onehot)

        @pl.when(is_tail)
        def _():
            lane = jax.lax.broadcasted_iota(jnp.int32, (1, block_n), 1)
            valid = (j * block_n + lane) < hw
            accumulate(jnp.where(valid, s, 0.0),
                       jnp.logical_and(onehot, valid))
    else:
        accumulate(s, onehot)

    @pl.when(k == bps - 1)
    def _():
        out_ref[...] = jnp.concatenate(
            [inter_acc[...], z_acc[...], y_acc[...]], axis=1)


def _dice_sums_class(score_bcn, tgt_b1n, *, block_n, softmax, vmem_limit):
    B, C, HW = score_bcn.shape
    num_blocks = pl.cdiv(HW, block_n)
    needs_mask = (HW % block_n) != 0
    # 2-way spatial split so an odd batch (esp. B=1) still feeds both v7x TCs.
    n_split = 2 if (B % 2 == 1 and num_blocks >= 2 and num_blocks % 2 == 0) else 1
    bps = num_blocks // n_split

    kernel = functools.partial(
        _dice_sums_class_kernel, hw=HW, block_n=block_n, bps=bps,
        num_blocks=num_blocks, softmax=softmax, needs_mask=needs_mask)

    flops_per_elem = 6 + (6 if softmax else 0)
    cost = pl.CostEstimate(
        flops=int(flops_per_elem * B * C * HW),
        transcendentals=int(B * C * HW) if softmax else 0,
        bytes_accessed=int(B * HW * (C * score_bcn.dtype.itemsize
                                     + tgt_b1n.dtype.itemsize)
                           + B * n_split * C * 3 * 4))

    return pl.pallas_call(
        kernel,
        out_shape=jax.ShapeDtypeStruct((B, n_split, C, 3), jnp.float32),
        grid_spec=pltpu.PrefetchScalarGridSpec(
            num_scalar_prefetch=0,
            grid=(B, n_split, bps),
            in_specs=[
                pl.BlockSpec((None, C, block_n),
                             lambda b, s, k: (b, 0, s * bps + k)),
                pl.BlockSpec((None, 1, block_n),
                             lambda b, s, k: (b, 0, s * bps + k)),
            ],
            out_specs=pl.BlockSpec((None, None, C, 3),
                                   lambda b, s, k: (b, s, 0, 0)),
            scratch_shapes=[
                pltpu.VMEM((C, 1), jnp.float32),   # intersect
                pltpu.VMEM((C, 1), jnp.float32),   # z_sum
                pltpu.VMEM((C, 1), jnp.float32),   # y_sum
            ],
        ),
        compiler_params=pltpu.CompilerParams(
            dimension_semantics=("parallel", "parallel", "arbitrary"),
            vmem_limit_bytes=vmem_limit),
        cost_estimate=cost,
    )(score_bcn, tgt_b1n)


# ---------------------------------------------------------------------------
# Kernel 2: lane-dense layout (softmax=False; full sublane occupancy)
# ---------------------------------------------------------------------------
def _dice_sums_dense_kernel(score_ref, tgt_ref, out_ref,
                            inter_acc, z_acc, y_acc, *,
                            n_rows, rows_blk, needs_mask):
    """One class per grid step, full (rows_blk, 128) vregs.

    score_ref: (rows_blk, 128) block of one class' scores (native dtype)
    tgt_ref:   (rows_blk, 128) block of class labels (int8/int32)
    out_ref:   (3, 128) per-(image, class) lane partials, written last step
    *_acc:     (1, 128) f32 VMEM accumulators, resident across the r axis
    """
    c = pl.program_id(1)
    r = pl.program_id(2)
    last = pl.num_programs(2) - 1

    @pl.when(r == 0)
    def _():
        inter_acc[...] = jnp.zeros_like(inter_acc)
        z_acc[...] = jnp.zeros_like(z_acc)
        y_acc[...] = jnp.zeros_like(y_acc)

    s = score_ref[...].astype(jnp.float32)                  # (rows_blk, 128)
    t = tgt_ref[...].astype(jnp.int32)                      # (rows_blk, 128)
    onehot = t == c

    def accumulate(sv, oh):
        inter_acc[...] += jnp.sum(jnp.where(oh, sv, 0.0), axis=0, keepdims=True)
        z_acc[...] += jnp.sum(sv * sv, axis=0, keepdims=True)
        y_acc[...] += jnp.sum(jnp.where(oh, 1.0, 0.0), axis=0, keepdims=True)

    if needs_mask:
        is_tail = r == last

        @pl.when(jnp.logical_not(is_tail))
        def _():
            accumulate(s, onehot)

        @pl.when(is_tail)
        def _():
            row = jax.lax.broadcasted_iota(jnp.int32, (rows_blk, 1), 0)
            valid = (r * rows_blk + row) < n_rows
            accumulate(jnp.where(valid, s, 0.0),
                       jnp.logical_and(onehot, valid))
    else:
        accumulate(s, onehot)

    @pl.when(r == last)
    def _():
        out_ref[...] = jnp.concatenate(
            [inter_acc[...], z_acc[...], y_acc[...]], axis=0)


def _dice_sums_dense(score_bcr, tgt_br, *, rows_blk, vmem_limit):
    B, C, R, L = score_bcr.shape
    assert L == 128
    n_rblocks = pl.cdiv(R, rows_blk)
    needs_mask = (R % rows_blk) != 0

    kernel = functools.partial(
        _dice_sums_dense_kernel, n_rows=R, rows_blk=rows_blk,
        needs_mask=needs_mask)

    cost = pl.CostEstimate(
        flops=int(7 * B * C * R * 128),
        transcendentals=0,
        bytes_accessed=int(B * C * R * 128 * (score_bcr.dtype.itemsize
                                              + tgt_br.dtype.itemsize)
                           + B * C * 3 * 128 * 4))

    return pl.pallas_call(
        kernel,
        out_shape=jax.ShapeDtypeStruct((B, C, 3, 128), jnp.float32),
        grid_spec=pltpu.PrefetchScalarGridSpec(
            num_scalar_prefetch=0,
            grid=(B, C, n_rblocks),
            in_specs=[
                pl.BlockSpec((None, None, rows_blk, 128),
                             lambda b, c, r: (b, c, r, 0)),
                pl.BlockSpec((None, rows_blk, 128),
                             lambda b, c, r: (b, r, 0)),
            ],
            out_specs=pl.BlockSpec((None, None, 3, 128),
                                   lambda b, c, r: (b, c, 0, 0)),
            scratch_shapes=[
                pltpu.VMEM((1, 128), jnp.float32),   # intersect
                pltpu.VMEM((1, 128), jnp.float32),   # z_sum
                pltpu.VMEM((1, 128), jnp.float32),   # y_sum
            ],
        ),
        compiler_params=pltpu.CompilerParams(
            dimension_semantics=("parallel", "parallel", "arbitrary"),
            vmem_limit_bytes=vmem_limit),
        cost_estimate=cost,
    )(score_bcr, tgt_br)


# ---------------------------------------------------------------------------
# Public wrapper (matches DiceLoss.forward semantics)
# ---------------------------------------------------------------------------
@functools.partial(jax.jit, static_argnames=("n_classes", "softmax", "block_n",
                                             "rows_blk", "layout"))
def dice_loss(inputs, target, *, n_classes, weight=None, softmax=False,
              block_n=None, rows_blk=None, layout="auto"):
    """JAX/Pallas equivalent of DiceLoss.forward.

    inputs: (B, C, H, W) scores (softmax applied in-kernel if softmax=True)
    target: (B, 1, H, W) integer class labels (any float/int dtype)
    """
    # TODO(synk): the PyTorch module also builds a host-side class_wise_dice
    # list via .item(); that diagnostic is not part of the returned loss and
    # is omitted here.
    B, C, H, W = inputs.shape
    assert C == n_classes, "predict & target class count do not match"
    HW = H * W

    vmem_limit, input_budget = _vmem_limits()

    if layout == "dense":
        assert not softmax, "dense layout only supports softmax=False"
        assert HW % 128 == 0, "dense layout requires H*W % 128 == 0"
        use_dense = True
    elif layout == "class":
        use_dense = False
    else:  # auto
        use_dense = ((not softmax) and block_n is None and (HW % 128 == 0)
                     and C < 8 and not _prefers_class_layout())

    if use_dense:
        R = HW // 128
        if rows_blk is None:
            rows_blk = _choose_rows_blk(R, inputs.dtype.itemsize, 1, input_budget)
        tgt_dtype = jnp.int8 if n_classes <= 127 else jnp.int32
        score_bcr = inputs.reshape(B, C, R, 128)              # free reshape
        tgt_br = target.reshape(B, R, 128).astype(tgt_dtype)  # narrow labels
        part = _dice_sums_dense(score_bcr, tgt_br, rows_blk=rows_blk,
                                vmem_limit=vmem_limit)        # (B, C, 3, 128)
        sums = jnp.sum(part, axis=(0, 3))                     # (C, 3)
    else:
        if block_n is None:
            block_n = _choose_block_n(HW, C, inputs.dtype.itemsize,
                                      target.dtype.itemsize, input_budget)
        score_bcn = inputs.reshape(B, C, HW)                  # free reshapes
        tgt_b1n = target.reshape(B, 1, HW)
        part = _dice_sums_class(score_bcn, tgt_b1n, block_n=block_n,
                                softmax=softmax, vmem_limit=vmem_limit)
        sums = jnp.sum(part, axis=(0, 1))                     # (C, 3)

    intersect, z_sum, y_sum = sums[:, 0], sums[:, 1], sums[:, 2]

    smooth = 1e-5
    dice_coeff = (2.0 * intersect + smooth) / (z_sum + y_sum + smooth)
    per_class_loss = 1.0 - dice_coeff                         # (C,)

    if weight is None:
        weight = jnp.ones((n_classes,), dtype=jnp.float32)
    else:
        weight = jnp.asarray(weight, dtype=jnp.float32)

    return jnp.sum(per_class_loss * weight) / n_classes


# ---------------------------------------------------------------------------
# Pure-JAX reference (mirrors the PyTorch module) for validation
# ---------------------------------------------------------------------------
def _reference_dice_loss(inputs, target, n_classes, weight=None, softmax=False):
    inputs = inputs.astype(jnp.float32)
    if softmax:
        inputs = jax.nn.softmax(inputs, axis=1)
    target = target.astype(jnp.float32)
    smooth = 1e-5
    if weight is None:
        weight = [1.0] * n_classes
    loss = 0.0
    for i in range(n_classes):
        score = inputs[:, i]
        tgt = (target[:, 0] == i).astype(jnp.float32)
        intersect = jnp.sum(score * tgt)
        y_sum = jnp.sum(tgt * tgt)
        z_sum = jnp.sum(score * score)
        dice = 1.0 - (2.0 * intersect + smooth) / (z_sum + y_sum + smooth)
        loss = loss + dice * weight[i]
    return loss / n_classes


if __name__ == "__main__":
    n_classes = 4
    key = jax.random.PRNGKey(0)

    def make(b, h, w, salt):
        k_in, k_tgt = jax.random.split(jax.random.fold_in(key, salt))
        x = jax.random.normal(k_in, (b, n_classes, h, w), dtype=jnp.float32)
        t = jax.random.randint(k_tgt, (b, 1, h, w), 0, n_classes).astype(
            jnp.float32)
        return x, t

    def check(name, got, ref, rtol):
        got = jax.block_until_ready(got)
        assert jnp.allclose(got, ref, rtol=rtol, atol=1e-5), (name, got, ref)

    # 1. softmax=True -> class-resident layout, fused softmax, single block.
    x, t = make(2, 16, 16, 0)
    check("softmax_auto",
          dice_loss(x, t, n_classes=n_classes, softmax=True),
          _reference_dice_loss(x, t, n_classes, softmax=True), rtol=2e-3)

    # 2. softmax=False in every layout (auto / lane-dense / class-resident).
    ref_nosm = _reference_dice_loss(x, t, n_classes, softmax=False)
    for lay in ("auto", "dense", "class"):
        check("nosoftmax_" + lay,
              dice_loss(x, t, n_classes=n_classes, softmax=False, layout=lay),
              ref_nosm, rtol=1e-4)

    # 3. B=1 + explicit small block: multi-block reduction with the 2-way
    #    spatial split (both TensorCores busy even with a single image).
    x1, t1 = make(1, 16, 16, 1)
    check("split_b1",
          dice_loss(x1, t1, n_classes=n_classes, softmax=True, block_n=128),
          _reference_dice_loss(x1, t1, n_classes, softmax=True), rtol=2e-3)

    # 4. HW not a multiple of the block: gated tail-mask path, plus weights.
    x2, t2 = make(2, 18, 14, 2)
    w = jnp.array([1.0, 2.0, 0.5, 1.5], dtype=jnp.float32)
    check("tail_weighted",
          dice_loss(x2, t2, n_classes=n_classes, weight=w, softmax=True,
                    block_n=128),
          _reference_dice_loss(x2, t2, n_classes, weight=w, softmax=True),
          rtol=2e-3)
    check("tail_nosoftmax",
          dice_loss(x2, t2, n_classes=n_classes, softmax=False, block_n=128),
          _reference_dice_loss(x2, t2, n_classes, softmax=False), rtol=1e-4)

    # 5. Lane-dense layout with several row blocks and a partial tail block.
    x3, t3 = make(1, 48, 48, 3)
    check("dense_tail",
          dice_loss(x3, t3, n_classes=n_classes, softmax=False,
                    layout="dense", rows_blk=8),
          _reference_dice_loss(x3, t3, n_classes, softmax=False), rtol=1e-4)

    print("KERNEL_OK")
</pallas_src>

<mosaic_0001>
module attributes {stable_mosaic.version = 11 : i64} {
  func.func @_dice_sums_class_kernel(%arg0: i32, %arg1: i32, %arg2: i32, %arg3: memref<1x4x256xf32, #tpu.memory_space<vmem>>, %arg4: memref<1x1x256xf32, #tpu.memory_space<vmem>>, %arg5: memref<1x1x4x3xf32, #tpu.memory_space<vmem>>, %arg6: memref<4x1xf32, #tpu.memory_space<vmem>>, %arg7: memref<4x1xf32, #tpu.memory_space<vmem>>, %arg8: memref<4x1xf32, #tpu.memory_space<vmem>>) attributes {dimension_semantics = [#tpu.dimension_semantics<parallel>, #tpu.dimension_semantics<parallel>, #tpu.dimension_semantics<arbitrary>], iteration_bounds = array<i64: 2, 1, 1>, scalar_prefetch = 0 : i64, scratch_operands = 3 : i64, tpu.core_type = #tpu.core_type<tc>, window_params = [{transform_indices = @transform_0, window_bounds = array<i64: 1, 4, 256>}, {transform_indices = @transform_1, window_bounds = array<i64: 1, 1, 256>}, {transform_indices = @transform_2, window_bounds = array<i64: 1, 1, 4, 3>}]} {
    %c0_i32 = arith.constant 0 : i32
    %0 = arith.cmpi eq, %arg2, %c0_i32 : i32
    %1 = arith.extui %0 : i1 to i32
    %c0_i32_0 = arith.constant 0 : i32
    %2 = arith.cmpi ne, %1, %c0_i32_0 : i32
    scf.if %2 {
      %cst_27 = arith.constant 0.000000e+00 : f32
      %46 = vector.broadcast %cst_27 : f32 to vector<4x1xf32>
      %c0_28 = arith.constant 0 : index
      %c0_29 = arith.constant 0 : index
      %47 = vector.load %arg6[%c0_28, %c0_29] : memref<4x1xf32, #tpu.memory_space<vmem>>, vector<4x1xf32>
      tpu.vector_store %arg6[%c0_28, %c0_29], %46 {strides = array<i32>} : memref<4x1xf32, #tpu.memory_space<vmem>>, vector<4x1xf32>,
      %cst_30 = arith.constant 0.000000e+00 : f32
      %48 = vector.broadcast %cst_30 : f32 to vector<4x1xf32>
      %c0_31 = arith.constant 0 : index
      %c0_32 = arith.constant 0 : index
      %49 = vector.load %arg7[%c0_31, %c0_32] : memref<4x1xf32, #tpu.memory_space<vmem>>, vector<4x1xf32>
      tpu.vector_store %arg7[%c0_31, %c0_32], %48 {strides = array<i32>} : memref<4x1xf32, #tpu.memory_space<vmem>>, vector<4x1xf32>,
      %cst_33 = arith.constant 0.000000e+00 : f32
      %50 = vector.broadcast %cst_33 : f32 to vector<4x1xf32>
      %c0_34 = arith.constant 0 : index
      %c0_35 = arith.constant 0 : index
      %51 = vector.load %arg8[%c0_34, %c0_35] : memref<4x1xf32, #tpu.memory_space<vmem>>, vector<4x1xf32>
      tpu.vector_store %arg8[%c0_34, %c0_35], %50 {strides = array<i32>} : memref<4x1xf32, #tpu.memory_space<vmem>>, vector<4x1xf32>,
    } else {
    }
    %c0 = arith.constant 0 : index
    %c0_1 = arith.constant 0 : index
    %c0_2 = arith.constant 0 : index
    %3 = vector.load %arg3[%c0, %c0_1, %c0_2] : memref<1x4x256xf32, #tpu.memory_space<vmem>>, vector<1x4x256xf32>
    %4 = vector.shape_cast %3 : vector<1x4x256xf32> to vector<4x256xf32>
    %c0_3 = arith.constant 0 : index
    %c0_4 = arith.constant 0 : index
    %c0_5 = arith.constant 0 : index
    %5 = vector.load %arg4[%c0_3, %c0_4, %c0_5] : memref<1x1x256xf32, #tpu.memory_space<vmem>>, vector<1x1x256xf32>
    %6 = vector.shape_cast %5 : vector<1x1x256xf32> to vector<1x256xf32>
    %7 = arith.fptosi %6 : vector<1x256xf32> to vector<1x256xi32>
    %cst = arith.constant dense<0xFF800000> : vector<256xf32>
    %8 = vector.multi_reduction <maximumf>, %4, %cst [0] : vector<4x256xf32> to vector<256xf32>
    %9 = vector.shape_cast %8 : vector<256xf32> to vector<1x256xf32>
    %10 = vector.broadcast %9 : vector<1x256xf32> to vector<4x256xf32>
    %11 = arith.subf %4, %10 : vector<4x256xf32>
    %12 = math.exp %11 : vector<4x256xf32>
    %cst_6 = arith.constant dense<0.000000e+00> : vector<256xf32>
    %13 = vector.multi_reduction <add>, %12, %cst_6 [0] : vector<4x256xf32> to vector<256xf32>
    %14 = vector.shape_cast %13 : vector<256xf32> to vector<1x256xf32>
    %15 = tpu.reciprocal %14 {approx = true} : vector<1x256xf32> -> vector<1x256xf32>
    %16 = vector.broadcast %15 : vector<1x256xf32> to vector<4x256xf32>
    %17 = arith.mulf %12, %16 : vector<4x256xf32>
    %18 = tpu.iota {dimensions = array<i32: 0>} : vector<4x1xi32>
    %19 = vector.broadcast %7 : vector<1x256xi32> to vector<4x256xi32>
    %20 = vector.broadcast %18 : vector<4x1xi32> to vector<4x256xi32>
    %21 = arith.cmpi eq, %19, %20 : vector<4x256xi32>
    %c0_7 = arith.constant 0 : index
    %c0_8 = arith.constant 0 : index
    %22 = vector.load %arg6[%c0_7, %c0_8] : memref<4x1xf32, #tpu.memory_space<vmem>>, vector<4x1xf32>
    %cst_9 = arith.constant 0.000000e+00 : f32
    %23 = vector.broadcast %cst_9 : f32 to vector<4x256xf32>
    %24 = arith.select %21, %17, %23 : vector<4x256xi1>, vector<4x256xf32>
    %cst_10 = arith.constant dense<0.000000e+00> : vector<4xf32>
    %25 = vector.multi_reduction <add>, %24, %cst_10 [1] : vector<4x256xf32> to vector<4xf32>
    %26 = vector.shape_cast %25 : vector<4xf32> to vector<4x1xf32>
    %27 = arith.addf %22, %26 : vector<4x1xf32>
    %c0_11 = arith.constant 0 : index
    %c0_12 = arith.constant 0 : index
    %28 = vector.load %arg6[%c0_11, %c0_12] : memref<4x1xf32, #tpu.memory_space<vmem>>, vector<4x1xf32>
    tpu.vector_store %arg6[%c0_11, %c0_12], %27 {strides = array<i32>} : memref<4x1xf32, #tpu.memory_space<vmem>>, vector<4x1xf32>,
    %c0_13 = arith.constant 0 : index
    %c0_14 = arith.constant 0 : index
    %29 = vector.load %arg7[%c0_13, %c0_14] : memref<4x1xf32, #tpu.memory_space<vmem>>, vector<4x1xf32>
    %30 = arith.mulf %17, %17 : vector<4x256xf32>
    %cst_15 = arith.constant dense<0.000000e+00> : vector<4xf32>
    %31 = vector.multi_reduction <add>, %30, %cst_15 [1] : vector<4x256xf32> to vector<4xf32>
    %32 = vector.shape_cast %31 : vector<4xf32> to vector<4x1xf32>
    %33 = arith.addf %29, %32 : vector<4x1xf32>
    %c0_16 = arith.constant 0 : index
    %c0_17 = arith.constant 0 : index
    %34 = vector.load %arg7[%c0_16, %c0_17] : memref<4x1xf32, #tpu.memory_space<vmem>>, vector<4x1xf32>
    tpu.vector_store %arg7[%c0_16, %c0_17], %33 {strides = array<i32>} : memref<4x1xf32, #tpu.memory_space<vmem>>, vector<4x1xf32>,
    %c0_18 = arith.constant 0 : index
    %c0_19 = arith.constant 0 : index
    %35 = vector.load %arg8[%c0_18, %c0_19] : memref<4x1xf32, #tpu.memory_space<vmem>>, vector<4x1xf32>
    %cst_20 = arith.constant 1.000000e+00 : f32
    %cst_21 = arith.constant 0.000000e+00 : f32
    %36 = vector.broadcast %cst_20 : f32 to vector<4x256xf32>
    %37 = vector.broadcast %cst_21 : f32 to vector<4x256xf32>
    %38 = arith.select %21, %36, %37 : vector<4x256xi1>, vector<4x256xf32>
    %cst_22 = arith.constant dense<0.000000e+00> : vector<4xf32>
    %39 = vector.multi_reduction <add>, %38, %cst_22 [1] : vector<4x256xf32> to vector<4xf32>
    %40 = vector.shape_cast %39 : vector<4xf32> to vector<4x1xf32>
    %41 = arith.addf %35, %40 : vector<4x1xf32>
    %c0_23 = arith.constant 0 : index
    %c0_24 = arith.constant 0 : index
    %42 = vector.load %arg8[%c0_23, %c0_24] : memref<4x1xf32, #tpu.memory_space<vmem>>, vector<4x1xf32>
    tpu.vector_store %arg8[%c0_23, %c0_24], %41 {strides = array<i32>} : memref<4x1xf32, #tpu.memory_space<vmem>>, vector<4x1xf32>,
    %c0_i32_25 = arith.constant 0 : i32
    %43 = arith.cmpi eq, %arg2, %c0_i32_25 : i32
    %44 = arith.extui %43 : i1 to i32
    %c0_i32_26 = arith.constant 0 : i32
    %45 = arith.cmpi ne, %44, %c0_i32_26 : i32
    scf.if %45 {
      %c0_27 = arith.constant 0 : index
      %c0_28 = arith.constant 0 : index
      %46 = vector.load %arg6[%c0_27, %c0_28] : memref<4x1xf32, #tpu.memory_space<vmem>>, vector<4x1xf32>
      %c0_29 = arith.constant 0 : index
      %c0_30 = arith.constant 0 : index
      %47 = vector.load %arg7[%c0_29, %c0_30] : memref<4x1xf32, #tpu.memory_space<vmem>>, vector<4x1xf32>
      %c0_31 = arith.constant 0 : index
      %c0_32 = arith.constant 0 : index
      %48 = vector.load %arg8[%c0_31, %c0_32] : memref<4x1xf32, #tpu.memory_space<vmem>>, vector<4x1xf32>
      %49 = tpu.concatenate %46, %47, %48 in 1 : vector<4x1xf32>, vector<4x1xf32>, vector<4x1xf32> -> vector<4x3xf32>
      %c0_33 = arith.constant 0 : index
      %c0_34 = arith.constant 0 : index
      %c0_35 = arith.constant 0 : index
      %c0_36 = arith.constant 0 : index
      %50 = vector.load %arg5[%c0_33, %c0_34, %c0_35, %c0_36] : memref<1x1x4x3xf32, #tpu.memory_space<vmem>>, vector<1x1x4x3xf32>
      %51 = vector.shape_cast %50 : vector<1x1x4x3xf32> to vector<4x3xf32>
      %52 = vector.shape_cast %49 : vector<4x3xf32> to vector<1x1x4x3xf32>
      tpu.vector_store %arg5[%c0_33, %c0_34, %c0_35, %c0_36], %52 {strides = array<i32>} : memref<1x1x4x3xf32, #tpu.memory_space<vmem>>, vector<1x1x4x3xf32>,
    } else {
    }
    return
  }
  func.func @transform_0(%arg0: i32, %arg1: i32, %arg2: i32) -> (i32, i32, i32) {
    %c1_i32 = arith.constant 1 : i32
    %0 = arith.muli %arg1, %c1_i32 : i32
    %1 = arith.addi %0, %arg2 : i32
    %c0_i32 = arith.constant 0 : i32
    %c0_i32_0 = arith.constant 0 : i32
    return %arg0, %c0_i32, %1 : i32, i32, i32
  }
  func.func @transform_1(%arg0: i32, %arg1: i32, %arg2: i32) -> (i32, i32, i32) {
    %c1_i32 = arith.constant 1 : i32
    %0 = arith.muli %arg1, %c1_i32 : i32
    %1 = arith.addi %0, %arg2 : i32
    %c0_i32 = arith.constant 0 : i32
    %c0_i32_0 = arith.constant 0 : i32
    return %arg0, %c0_i32, %1 : i32, i32, i32
  }
  func.func @transform_2(%arg0: i32, %arg1: i32, %arg2: i32) -> (i32, i32, i32, i32) {
    %c0_i32 = arith.constant 0 : i32
    %c0_i32_0 = arith.constant 0 : i32
    %c0_i32_1 = arith.constant 0 : i32
    return %arg0, %arg1, %c0_i32, %c0_i32_0 : i32, i32, i32, i32
  }
}

</mosaic_0001>

<llo_original>
// kernel: dice_loss.1
$region0: #{dice_loss.1}
  #allocation0 [shape = 'u32[]', space=smem, size = 0x4, offset = 0x4, fixed_abs, tag = 'smem constant byte address 0x4 - core index']
  #allocation1 [shape = 'u32[144,128]{1,0:T(1,128)}', space=vmem, size = 0x12000, scoped, tag = 'internal scratch']
  #allocation2 [shape = 'f32[4,1]{1,0:T(4,128)}', space=vmem, size = 0x800, scoped, tag = 'scratch operand']
  #allocation3 [shape = 'f32[4,1]{1,0:T(4,128)}', space=vmem, size = 0x800, scoped, tag = 'scratch operand']
  #allocation4 [shape = 'f32[4,1]{1,0:T(4,128)}', space=vmem, size = 0x800, scoped, tag = 'scratch operand']
  %s0 = inlined_call_operand.vmem [shape: f32[2,4,256], index: 0, kind: input, shape index: {}]
  %s1 = inlined_call_operand.vmem [shape: f32[2,1,256], index: 1, kind: input, shape index: {}]
  %s2 = inlined_call_operand.vmem [shape: f32[2,1,4,3], index: 2, kind: output, shape index: {}]
  %s3 = sld [smem:[#allocation0]]
  $region49: #{dice_loss.1} parent=0
    _
  %s5 = ssub.s32 1, %s3
  %s6 = scalar_select 0, %s5, %s3
  loop: start=0, step=1, limit=4
  $region2: #{dice_loss.1} parent=0 // loop_pre_header
    _
  $region3: #{dice_loss.1} parent=0 // loop_header
    %s8 = sphi 0, %s12
    %p9 = scmp.ge.s32.totalorder %s8, 4
    %s15 = sphi 0, %s34
    %s16 = sphi 0, %s30
    %s17 = sphi 0, %s26
    %s18 = sphi 0, %s15
    %s19 = sphi 0, %s16
    %s20 = sphi 0, %s17
    %s21 = sphi 0, %s18
    %s22 = sphi 0, %s19
    %s23 = sphi 0, %s20
    %s41 = sphi 0, %s43
    %s44 = sphi 0, %s41
    %s45 = sphi 0, %s44
    %s61 = sphi 0, %s45
    %s71 = sphi 0, %s73
    %s74 = sphi 0, %s71
    %s75 = sphi 0, %s74
    %s91 = sphi 0, %s75
    %s99 = sphi 0, %s101
    %s102 = sphi 0, %s99
    %s103 = sphi 0, %s102
    %s119 = sphi 0, %s103
  $region4: #{dice_loss.1} parent=0 // loop_header_branch
    %11 = sbr.rel (%p9) target = $region8
  $region5: #{dice_loss.1} parent=0 // loop_body
    %s13 = ssub.s32 %s8, 1
    %s14 = ssub.s32 %s8, 2
    %s24 = sadd.s32 1, %s17
    %p25 = scmp.ge.s32.totalorder %s24, 1
    %s26 = scalar_select %p25, 0, %s24
    %s27 = sadd.s32 1, %s16
    %s28 = scalar_select %p25, %s27, %s16
    %p29 = scmp.ge.s32.totalorder %s28, 1
    %s30 = scalar_select %p29, 0, %s28
    %s31 = sadd.s32 1, %s15
    %s32 = scalar_select %p29, %s31, %s15
    %p33 = scmp.ge.s32.totalorder %s32, 2
    %s34 = scalar_select %p33, 0, %s32
    %s35 = sadd.s32 %s16, %s17
    %s36 = sadd.s32 %s30, %s26
    %s37 = ssub.s32 %s15, %s34
    %s38 = ssub.s32 %s35, %s36
    %s39 = sor.u32 %s37, %s38
    %p40 = scmp.eq.s32.totalorder %s39, 0
    %s42 = sadd.s32 %s41, 1
    %s43 = scalar_select %p40, %s41, %s42
    %p46 = pneg %p40
    %p47 = scmp.eq.s32.totalorder %s8, 1
    %p48 = por %p46, %p47
    %p49 = scmp.ne.s32.totalorder %s41, %s44
    %p50 = scmp.eq.s32.totalorder %s8, 0
    %p51 = por %p49, %p50
    %p52 = scmp.ne.s32.totalorder %s41, %s44
    %p53 = scmp.eq.s32.totalorder %s13, 1
    %p54 = por %p52, %p53
    %p55 = scmp.ne.s32.totalorder %s44, %s45
    %p56 = scmp.eq.s32.totalorder %s13, 0
    %p57 = por %p55, %p56
    %p58 = scmp.ne.s32.totalorder %s44, %s45
    %p59 = scmp.eq.s32.totalorder %s14, 1
    %p60 = por %p58, %p59
    %p62 = scmp.ne.s32.totalorder %s45, %s61
    %p63 = scmp.eq.s32.totalorder %s14, 0
    %p64 = por %p62, %p63
    %s65 = sadd.s32 %s16, %s17
    %s66 = sadd.s32 %s30, %s26
    %s67 = ssub.s32 %s15, %s34
    %s68 = ssub.s32 %s65, %s66
    %s69 = sor.u32 %s67, %s68
    %p70 = scmp.eq.s32.totalorder %s69, 0
    %s72 = sadd.s32 %s71, 1
    %s73 = scalar_select %p70, %s71, %s72
    %p76 = pneg %p70
    %p77 = scmp.eq.s32.totalorder %s8, 1
    %p78 = por %p76, %p77
    %p79 = scmp.ne.s32.totalorder %s71, %s74
    %p80 = scmp.eq.s32.totalorder %s8, 0
    %p81 = por %p79, %p80
    %p82 = scmp.ne.s32.totalorder %s71, %s74
    %p83 = scmp.eq.s32.totalorder %s13, 1
    %p84 = por %p82, %p83
    %p85 = scmp.ne.s32.totalorder %s74, %s75
    %p86 = scmp.eq.s32.totalorder %s13, 0
    %p87 = por %p85, %p86
    %p88 = scmp.ne.s32.totalorder %s74, %s75
    %p89 = scmp.eq.s32.totalorder %s14, 1
    %p90 = por %p88, %p89
    %p92 = scmp.ne.s32.totalorder %s75, %s91
    %p93 = scmp.eq.s32.totalorder %s14, 0
    %p94 = por %p92, %p93
    %s95 = ssub.s32 %s15, %s34
    %s96 = ssub.s32 %s16, %s30
    %s97 = sor.u32 %s95, %s96
    %p98 = scmp.eq.s32.totalorder %s97, 0
    %s100 = sadd.s32 %s99, 1
    %s101 = scalar_select %p98, %s99, %s100
    %p104 = pneg %p98
    %p105 = scmp.eq.s32.totalorder %s8, 1
    %p106 = por %p104, %p105
    %p107 = scmp.ne.s32.totalorder %s99, %s102
    %p108 = scmp.eq.s32.totalorder %s8, 0
    %p109 = por %p107, %p108
    %p110 = scmp.ne.s32.totalorder %s99, %s102
    %p111 = scmp.eq.s32.totalorder %s13, 1
    %p112 = por %p110, %p111
    %p113 = scmp.ne.s32.totalorder %s102, %s103
    %p114 = scmp.eq.s32.totalorder %s13, 0
    %p115 = por %p113, %p114
    %p116 = scmp.ne.s32.totalorder %s102, %s103
    %p117 = scmp.eq.s32.totalorder %s14, 1
    %p118 = por %p116, %p117
    %p120 = scmp.ne.s32.totalorder %s103, %s119
    %p121 = scmp.eq.s32.totalorder %s14, 0
    %p122 = por %p120, %p121
    %p123 = scmp.le.s32.totalorder 1, %s8
    %p124 = scmp.lt.s32.totalorder %s8, 3
    %p125 = pnand %p123, %p124
    %p126 = pneg %p125
    // Predicated region
    $region9: #{dice_loss.1} parent=5 // pred_check
      _
    $region10: #{dice_loss.1} parent=5 // pred_check_branch
      %128 = sbr.rel (%p125) target = $region12
    $region11: #{dice_loss.1} parent=5 // pred_region
      %s129 = ssub.s32 %s8, 1
    $region12: #{dice_loss.1} parent=5 // pred_fallthru
      _
    %p130 = scmp.lt.s32.totalorder %s8, 2
    // Predicated region
    $region13: #{dice_loss.1} parent=5 // pred_check
      %p131 = pneg %p130
    $region14: #{dice_loss.1} parent=5 // pred_check_branch
      %133 = sbr.rel (%p131) target = $region16
    $region15: #{dice_loss.1} parent=5 // pred_region
      // Predicated region
      $region17: #{dice_loss.1} parent=15 // pred_check
        %p134 = pneg %p51
      $region18: #{dice_loss.1} parent=15 // pred_check_branch
        %136 = sbr.rel (%p134) target = $region20
      $region19: #{dice_loss.1} parent=15 // pred_region
        %s137 = sadd.s32 %s16, %s17
        %s138 = smul.u32 2, %s137
        %p139 = scmp.lt.s32.totalorder %s15, 1
        %s140 = scalar_select %p139, %s15, 1
        %p141 = scmp.lt.s32.totalorder %s138, 1
        %s142 = scalar_select %p141, %s138, 1
        %s143 = smul.addr %s140, 2
        %s144 = sadd.s32 %s142, %s143
        %s145 = smul.addr %s144, 4
        %s146 = scalar_lea.vmem %s0, %s145
        %s147 = sadd.s32 %s16, %s17
        %s148 = smul.u32 2, %s147
      $region20: #{dice_loss.1} parent=15 // pred_fallthru
        _
      // Predicated region
      $region21: #{dice_loss.1} parent=15 // pred_check
        %p149 = pneg %p81
      $region22: #{dice_loss.1} parent=15 // pred_check_branch
        %151 = sbr.rel (%p149) target = $region24
      $region23: #{dice_loss.1} parent=15 // pred_region
        %s152 = sadd.s32 %s16, %s17
        %s153 = smul.u32 2, %s152
        %p154 = scmp.lt.s32.totalorder %s15, 1
        %s155 = scalar_select %p154, %s15, 1
        %p156 = scmp.lt.s32.totalorder %s153, 1
        %s157 = scalar_select %p156, %s153, 1
        %s158 = smul.addr %s155, 2
        %s159 = sadd.s32 %s157, %s158
        %s160 = scalar_lea.vmem %s1, %s159
        %s161 = sadd.s32 %s16, %s17
        %s162 = smul.u32 2, %s161
      $region24: #{dice_loss.1} parent=15 // pred_fallthru
        _
    $region16: #{dice_loss.1} parent=5 // pred_fallthru
      _
    %p163 = scmp.le.s32.totalorder 1, %s8
    %p164 = scmp.lt.s32.totalorder %s8, 3
    %p165 = pnand %p163, %p164
    %p166 = pneg %p165
    // Predicated region
    $region25: #{dice_loss.1} parent=5 // pred_check
      _
    $region26: #{dice_loss.1} parent=5 // pred_check_branch
      %168 = sbr.rel (%p165) target = $region28
    $region27: #{dice_loss.1} parent=5 // pred_region
      %s169 = ssub.s32 %s8, 1
      %s170 = sadd.s32 %s19, %s20
      %s171 = smul.u32 2, %s170
      %p172 = scmp.lt.s32.totalorder %s18, 1
      %s173 = scalar_select %p172, %s18, 1
      %p174 = scmp.lt.s32.totalorder %s171, 1
      %s175 = scalar_select %p174, %s171, 1
      %s176 = smul.addr %s173, 2
      %s177 = sadd.s32 %s175, %s176
      %s178 = smul.addr %s177, 4
      %s179 = scalar_lea.vmem %s0, %s178
      %p180 = pneg %p57
      %p181 = pneg %p54
      %s182 = sadd.s32 %s19, %s20
      %s183 = smul.u32 2, %s182
      %p184 = scmp.lt.s32.totalorder %s18, 1
      %s185 = scalar_select %p184, %s18, 1
      %p186 = scmp.lt.s32.totalorder %s183, 1
      %s187 = scalar_select %p186, %s183, 1
      %s188 = smul.addr %s185, 2
      %s189 = sadd.s32 %s187, %s188
      %s190 = scalar_lea.vmem %s1, %s189
      %p191 = pneg %p87
      %p192 = pneg %p84
      %p193 = pneg %p115
      %p194 = pneg %p112
      %p195 = scmp.lt.s32.totalorder %s18, 1
      %s196 = scalar_select %p195, %s18, 1
      %p197 = scmp.lt.s32.totalorder %s19, 0
      %s198 = scalar_select %p197, %s19, 0
      %s199 = sadd.s32 %s198, %s196
      %s200 = smul.addr %s199, 4
      %s201 = scalar_lea.vmem %s2, %s200
      %s202 = sadd.s32 %s19, %s20
      %s203 = smul.u32 2, %s202
      %p204 = scmp.lt.s32.totalorder %s18, 1
      %s205 = scalar_select %p204, %s18, 1
      %p206 = scmp.lt.s32.totalorder %s203, 1
      %s207 = scalar_select %p206, %s203, 1
      %s208 = smul.addr %s205, 2
      %s209 = sadd.s32 %s207, %s208
      %s210 = smul.addr %s209, 4
      %s211 = scalar_lea.vmem %s0, %s210
      %s212 = sadd.s32 %s19, %s20
      %s213 = smul.u32 2, %s212
      %s214 = sadd.s32 %s19, %s20
      %s215 = smul.u32 2, %s214
      %p216 = scmp.lt.s32.totalorder %s18, 1
      %s217 = scalar_select %p216, %s18, 1
      %p218 = scmp.lt.s32.totalorder %s215, 1
      %s219 = scalar_select %p218, %s215, 1
      %s220 = smul.addr %s217, 2
      %s221 = sadd.s32 %s219, %s220
      %s222 = scalar_lea.vmem %s1, %s221
      %s223 = sadd.s32 %s19, %s20
      %s224 = smul.u32 2, %s223
      %p225 = scmp.lt.s32.totalorder %s18, 1
      %s226 = scalar_select %p225, %s18, 1
      %p227 = scmp.lt.s32.totalorder %s19, 0
      %s228 = scalar_select %p227, %s19, 0
      %s229 = sadd.s32 %s228, %s226
      %s230 = smul.addr %s229, 4
      %s231 = scalar_lea.vmem %s2, %s230
      %p232 = scmp.eq.s32.totalorder %s20, 0
      // Predicated region
      $region29: #{dice_loss.1} parent=27 // pred_check
        %p233 = pneg %p232
      $region30: #{dice_loss.1} parent=27 // pred_check_branch
        %235 = sbr.rel (%p233) target = $region32
      $region31: #{dice_loss.1} parent=27 // pred_region
        %vm236 = vcmask 3072
        %237 = vst.msk [vmem:[#allocation2] sm:$0xf] %vm236, 0.0
        %238 = vst.msk [vmem:[#allocation3] sm:$0xf] %vm236, 0.0
        %239 = vst.msk [vmem:[#allocation4] sm:$0xf] %vm236, 0.0
      $region32: #{dice_loss.1} parent=27 // pred_fallthru
        _
      %v240 = vld [vmem:[%s211] sm:$0xff]
      %v241 = vld [vmem:[%s222] sm:$0x3]
      %v242 = vcvt.f32.s32.to.zero.pseudo %v241
      %v244 = vcombine.high %v240, %v240
      %vm246 = vcmask 1043456
      %v247 = vsel %vm246, %v240, -inf
      %v248 = vrot.slane %v247, 4
      %v249 = vmax.f32 %v247, %v248
      %v250 = vrot.slane %v249, 2
      %v251 = vmax.f32 %v249, %v250
      %v252 = vrot.slane %v251, 1
      %v253 = vmax.f32 %v251, %v252
      %v254 = vsel %vm246, %v244, -inf
      %v255 = vrot.slane %v254, 4
      %v256 = vmax.f32 %v254, %v255
      %v257 = vrot.slane %v256, 2
      %v258 = vmax.f32 %v256, %v257
      %v259 = vrot.slane %v258, 1
      %v260 = vmax.f32 %v258, %v259
      %v263 = vcombine.low %v253, %v260
      %v265 = vsub.f32 %v240, %v263
      %v266 = vmul.f32 %v265, 1.442695
      %v267 = vpow.pop %v266
      %v269 = vcombine.high %v267, %v267
      %v271 = vsel %vm246, %v267, 0.0
      %v272 = vrot.slane %v271, 4
      %v273 = vadd.f32 %v271, %v272
      %v274 = vrot.slane %v273, 2
      %v275 = vadd.f32 %v273, %v274
      %v276 = vrot.slane %v275, 1
      %v277 = vadd.f32 %v275, %v276
      %v278 = vsel %vm246, %v269, 0.0
      %v279 = vrot.slane %v278, 4
      %v280 = vadd.f32 %v278, %v279
      %v281 = vrot.slane %v280, 2
      %v282 = vadd.f32 %v280, %v281
      %v283 = vrot.slane %v282, 1
      %v284 = vadd.f32 %v282, %v283
      %v285 = vrcp.pop %v277
      %v286 = vrcp.pop %v284
      %v289 = vcombine.low %v285, %v286
      %v291 = vmul.f32 %v267, %v289
      %v292 = vlaneseq
      %v293 = vshrl.u32 %v292, 7
      %v294 = vlaneseq
      %v295 = vshrl.u32 %v294, 7
      %v296 = vsub.s32 0, %v295
      %v297 = vrot.slane %v242, %v296
      %v298 = vlaneseq
      %v299 = vshrl.u32 %v298, 7
      %v300 = vsub.s32 1, %v299
      %v301 = vrot.slane %v242, %v300
      %vm302 = vcmp.eq.s32.totalorder %v297, %v293
      %vm303 = vcmp.eq.s32.totalorder %v301, %v293
      %v304 = vld [vmem:[#allocation2] sm:$0xf]
      %v306 = vcombine.high %v291, %v291
      %v308 = vsel %vm302, %v291, 0.0
      %v309 = vsel %vm303, %v306, 0.0
      %v310 = vsel %vm246, %v308, 0.0
      %v311 = vsel %vm246, %v309, 0.0
      %v312 = vadd.f32 %v310, %v311
      %313 = vadd.xlane.f32.xlu0 %v312
      %v314 = vpop.xlane.xlu0 %313
      %v315 = vadd.f32 %v304, %v314
      %vm316 = vcmask 3072
      %317 = vst.msk [vmem:[#allocation2] sm:$0xf] %vm316, %v315
      %v318 = vld [vmem:[#allocation3] sm:$0xf]
      %v319 = vmul.f32 %v291, %v291
      %v321 = vcombine.high %v319, %v319
      %v323 = vsel %vm246, %v319, 0.0
      %v324 = vsel %vm246, %v321, 0.0
      %v325 = vadd.f32 %v323, %v324
      %326 = vadd.xlane.f32.xlu0 %v325
      %v327 = vpop.xlane.xlu0 %326
      %v328 = vadd.f32 %v318, %v327
      %329 = vst.msk [vmem:[#allocation3] sm:$0xf] %vm316, %v328
      %v330 = vld [vmem:[#allocation4] sm:$0xf]
      %v331 = vsel %vm302, 1.0, 0.0
      %v332 = vsel %vm303, 1.0, 0.0
      %v333 = vsel %vm246, %v331, 0.0
      %v334 = vsel %vm246, %v332, 0.0
      %v335 = vadd.f32 %v333, %v334
      %336 = vadd.xlane.f32.xlu0 %v335
      %v337 = vpop.xlane.xlu0 %336
      %v338 = vadd.f32 %v330, %v337
      %339 = vst.msk [vmem:[#allocation4] sm:$0xf] %vm316, %v338
      // Predicated region
      $region33: #{dice_loss.1} parent=27 // pred_check
        %p340 = pneg %p232
      $region34: #{dice_loss.1} parent=27 // pred_check_branch
        %342 = sbr.rel (%p340) target = $region36
      $region35: #{dice_loss.1} parent=27 // pred_region
        %v343 = vld [vmem:[#allocation2] sm:$0xf]
        %v344 = vld [vmem:[#allocation3] sm:$0xf]
        %v345 = vld [vmem:[#allocation4] sm:$0xf]
        %347 = vrot.lane.b32.xlu0 %v344, 1
        %v348 = vpop.permute.xlu0 %347
        %351 = vrot.lane.b32.xlu0 %v345, 2
        %v352 = vpop.permute.xlu0 %351
        %vm354 = vcmask 7168
        %v355 = vsel %vm354, %v343, %v348
        %vm356 = vcmask 15360
        %v357 = vsel %vm356, %v355, %v352
        %vm358 = vcmask 19456
        %359 = vst.msk [vmem:[%s231] sm:$0xf] %vm358, %v357
      $region36: #{dice_loss.1} parent=27 // pred_fallthru
        _
      %p360 = scmp.lt.s32.totalorder %s18, 1
      %s361 = scalar_select %p360, %s18, 1
      %p362 = scmp.lt.s32.totalorder %s19, 0
      %s363 = scalar_select %p362, %s19, 0
      %s364 = sadd.s32 %s363, %s361
      %s365 = smul.addr %s364, 4
      %s366 = scalar_lea.vmem %s2, %s365
      // Predicated region
      $region37: #{dice_loss.1} parent=27 // pred_check
        %p367 = pneg %p112
      $region38: #{dice_loss.1} parent=27 // pred_check_branch
        %369 = sbr.rel (%p367) target = $region40
      $region39: #{dice_loss.1} parent=27 // pred_region
        _
      $region40: #{dice_loss.1} parent=27 // pred_fallthru
        _
    $region28: #{dice_loss.1} parent=5 // pred_fallthru
      _
    %p370 = scmp.le.s32.totalorder 2, %s8
    // Predicated region
    $region41: #{dice_loss.1} parent=5 // pred_check
      %p371 = pneg %p370
    $region42: #{dice_loss.1} parent=5 // pred_check_branch
      %373 = sbr.rel (%p371) target = $region44
    $region43: #{dice_loss.1} parent=5 // pred_region
      %s374 = ssub.s32 %s8, 2
      // Predicated region
      $region45: #{dice_loss.1} parent=43 // pred_check
        %p375 = pneg %p118
      $region46: #{dice_loss.1} parent=43 // pred_check_branch
        %377 = sbr.rel (%p375) target = $region48
      $region47: #{dice_loss.1} parent=43 // pred_region
        %p378 = scmp.lt.s32.totalorder %s21, 1
        %s379 = scalar_select %p378, %s21, 1
        %p380 = scmp.lt.s32.totalorder %s22, 0
        %s381 = scalar_select %p380, %s22, 0
        %s382 = sadd.s32 %s381, %s379
        %s383 = smul.addr %s382, 4
        %s384 = scalar_lea.vmem %s2, %s383
      $region48: #{dice_loss.1} parent=43 // pred_fallthru
        _
    $region44: #{dice_loss.1} parent=5 // pred_fallthru
      _
  $region6: #{dice_loss.1} parent=0 // loop_footer
    %s12 = sadd.s32 1, %s8
  $region7: #{dice_loss.1} parent=0 // loop_footer_branch
    %7 = sbr.rel target = $region3
  $region8: #{dice_loss.1} parent=0 // loop_exit
    _

</llo_original>
